<compile_context>
chip_gen: v7x
topology: tpu7x:2x2x1
jax: 0.10.0
libtpu: 0.0.40
codegen_flags: <defaults>
</compile_context>

<pallas_src>
import jax
import jax.numpy as jnp
from jax import lax
from jax.experimental import pallas as pl
from jax.experimental.pallas import tpu as pltpu

_BETA = 1.0
_HALF_OVER_BETA = 0.5 / _BETA      # hoisted: multiply, never a per-element divide

_LANES = 128
_SUBLANES = 8
_ROW_ALIGN = 32                    # block sublane granularity, legal for f32/bf16/f16/int8
_CHUNK_ROWS = 512                  # 512 x 128 x 4 B = 256 KiB f32 per chunk temporary
_MAX_TILE_ROWS = 4096              # 2 MiB f32 per input block
_NUM_SHARDS_MAX = 2                # 2nd TensorCore on v7x; harmless serial loop elsewhere
_VMEM_LIMIT = 40 * 1024 * 1024     # v7x-safe cap (64 MiB physical); fine on v5e/v6e too


def _cdiv(a, b):
    return -(-a // b)


def _round_up(a, b):
    return _cdiv(a, b) * b


def _plan(rows):
    """Pick (tile_rows, chunk_rows, num_shards, k_blocks, total_blocks)."""
    if rows <= _CHUNK_ROWS:
        tile_rows = _round_up(max(rows, _ROW_ALIGN), _ROW_ALIGN)
        chunk_rows = tile_rows
    else:
        tile_rows = min(_MAX_TILE_ROWS, _round_up(rows, _CHUNK_ROWS))
        chunk_rows = _CHUNK_ROWS
    total_blocks = _cdiv(rows, tile_rows)
    num_shards = _NUM_SHARDS_MAX if total_blocks >= _NUM_SHARDS_MAX else 1
    k_blocks = _cdiv(total_blocks, num_shards)
    return tile_rows, chunk_rows, num_shards, k_blocks, total_blocks


def _make_kernel(tile_rows, chunk_rows, k_blocks, rows_valid):
    n_chunks = tile_rows // chunk_rows

    def kernel(o_ref, t_ref, sse_ref, sq2_ref):
        i = pl.program_id(0)      # shard (parallel axis)
        k = pl.program_id(1)      # block within shard (arbitrary / streaming axis)

        # Resident output blocks double as accumulators: zero at stream start.
        @pl.when(k == 0)
        def _():
            sse_ref[...] = jnp.zeros_like(sse_ref)
            sq2_ref[...] = jnp.zeros_like(sq2_ref)

        # Logical (unclamped) first row of this grid step.
        row_start = (i * k_blocks + k) * tile_rows

        def accumulate(masked):
            if masked:
                # Hoisted out of the chunk loop (broadcasts are not CSE'd).
                rid = lax.broadcasted_iota(jnp.int32, (chunk_rows, _LANES), 0)

            def body(c, carry):
                s_sse, s_sq2 = carry
                r0 = pl.multiple_of(c * chunk_rows, chunk_rows)
                o = o_ref[pl.ds(r0, chunk_rows), :].astype(jnp.float32)
                t = t_ref[pl.ds(r0, chunk_rows), :].astype(jnp.float32)
                d = o - t
                if masked:
                    valid = (row_start + r0 + rid) < rows_valid
                    d = jnp.where(valid, d, 0.0)        # zero rows contribute 0 to both sums
                d2 = d * d
                m = jnp.maximum(jnp.abs(d) - _BETA, 0.0)
                m2 = m * m
                ns = chunk_rows // _SUBLANES
                # Pure VPU adds down to one (8,128) vreg per accumulator.
                s_sse = s_sse + jnp.sum(d2.reshape(ns, _SUBLANES, _LANES), axis=0)
                s_sq2 = s_sq2 + jnp.sum(m2.reshape(ns, _SUBLANES, _LANES), axis=0)
                return s_sse, s_sq2

            zeros = jnp.zeros((_SUBLANES, _LANES), jnp.float32)
            s_sse, s_sq2 = lax.fori_loop(0, n_chunks, body, (zeros, zeros), unroll=True)
            sse_ref[...] += s_sse
            sq2_ref[...] += s_sq2

        block_full = (row_start + tile_rows) <= rows_valid

        @pl.when(block_full)            # fast path: no per-element select
        def _():
            accumulate(masked=False)

        @pl.when(jnp.logical_not(block_full))   # at most one partial block per shard
        def _():
            accumulate(masked=True)

    return kernel


def _partial_sums(o2d, t2d):
    rows, lanes = o2d.shape
    assert lanes == _LANES
    tile_rows, chunk_rows, num_shards, k_blocks, total_blocks = _plan(rows)
    last_block = total_blocks - 1

    def in_map(i, k):
        # Clamp: an excess (i,k) slot (odd block count split over 2 shards) refetches
        # the last real block; the kernel fully masks it, so it contributes 0.
        return (jnp.minimum(i * k_blocks + k, last_block), 0)

    def out_map(i, k):
        return (i, 0)

    out_shape = jax.ShapeDtypeStruct((num_shards * _SUBLANES, _LANES), jnp.float32)
    kernel = _make_kernel(tile_rows, chunk_rows, k_blocks, rows)

    sse, sq2 = pl.pallas_call(
        kernel,
        out_shape=(out_shape, out_shape),
        grid_spec=pltpu.PrefetchScalarGridSpec(
            num_scalar_prefetch=0,
            grid=(num_shards, k_blocks),
            in_specs=[pl.BlockSpec((tile_rows, _LANES), in_map),
                      pl.BlockSpec((tile_rows, _LANES), in_map)],
            out_specs=[pl.BlockSpec((_SUBLANES, _LANES), out_map),
                       pl.BlockSpec((_SUBLANES, _LANES), out_map)],
        ),
        compiler_params=pltpu.CompilerParams(
            dimension_semantics=("parallel", "arbitrary"),
            vmem_limit_bytes=_VMEM_LIMIT,
        ),
    )(o2d, t2d)
    return jnp.sum(sse), jnp.sum(sq2)


def custom_loss(output, target, *, w_mse=0.7, w_smooth_l1=0.3):
    """Pallas equivalent of CustomLoss({'MSE': w_mse, 'SmoothL1': w_smooth_l1})."""
    assert output.shape == target.shape
    if output.dtype != target.dtype or output.dtype not in (jnp.float32, jnp.bfloat16, jnp.float16):
        output = output.astype(jnp.float32)
        target = target.astype(jnp.float32)

    n_elems = output.size
    o_flat = output.reshape(-1)          # free reshape (contiguous)
    t_flat = target.reshape(-1)

    rem = n_elems % _LANES
    if rem:
        # TODO(synk): a fully copy-free ragged path needs manual DMA of the unaligned
        # tail; here we pad by < 128 elements (one HBM copy) only when numel % 128 != 0.
        pad = _LANES - rem
        o_flat = jnp.pad(o_flat, (0, pad))
        t_flat = jnp.pad(t_flat, (0, pad))

    rows = o_flat.size // _LANES
    o2d = o_flat.reshape(rows, _LANES)   # free reshape
    t2d = t_flat.reshape(rows, _LANES)

    sse, sq2 = _partial_sums(o2d, t2d)

    inv_n = jnp.float32(1.0 / n_elems)            # divide by the TRUE element count
    mse_mean = sse * inv_n
    # Huber identity: smooth_l1(d) = (0.5/beta) * (d^2 - max(|d|-beta,0)^2)
    sl1_mean = _HALF_OVER_BETA * (sse - sq2) * inv_n
    return w_mse * mse_mean + w_smooth_l1 * sl1_mean


def _reference(output, target, *, w_mse=0.7, w_smooth_l1=0.3, beta=_BETA):
    d = output.astype(jnp.float32) - target.astype(jnp.float32)
    mse = jnp.mean(d * d)
    ad = jnp.abs(d)
    sl1 = jnp.mean(jnp.where(ad < beta, 0.5 * d * d / beta, ad - 0.5 * beta))
    return w_mse * mse + w_smooth_l1 * sl1


if __name__ == "__main__":
    key = jax.random.PRNGKey(0)
    k1, k2, k3, k4, k5, k6 = jax.random.split(key, 6)

    loss_fn = jax.jit(custom_loss)

    # 1) NCHW, lane-aligned element count (2*4*16*16 = 2048): no pad path.
    o1 = jax.random.normal(k1, (2, 4, 16, 16), dtype=jnp.float32)
    t1 = jax.random.normal(k2, (2, 4, 16, 16), dtype=jnp.float32)
    l1 = loss_fn(o1, t1)
    jax.block_until_ready(l1)
    r1 = _reference(o1, t1)
    assert jnp.allclose(l1, r1, rtol=1e-5, atol=1e-5), (l1, r1)

    # 2) Ragged shape (3*3*7*5 = 315): exercises the <128-element lane pad + in-kernel row mask.
    o2 = jax.random.normal(k3, (3, 3, 7, 5), dtype=jnp.float32)
    t2 = jax.random.normal(k4, (3, 3, 7, 5), dtype=jnp.float32)
    l2 = loss_fn(o2, t2)
    jax.block_until_ready(l2)
    r2 = _reference(o2, t2)
    assert jnp.allclose(l2, r2, rtol=1e-5, atol=1e-5), (l2, r2)

    # 3) bf16 inputs (halved HBM traffic), exercises the unmasked fast path.
    o3 = jax.random.normal(k5, (4, 8, 32, 32), dtype=jnp.float32).astype(jnp.bfloat16)
    t3 = jax.random.normal(k6, (4, 8, 32, 32), dtype=jnp.float32).astype(jnp.bfloat16)
    l3 = loss_fn(o3, t3)
    jax.block_until_ready(l3)
    r3 = _reference(o3, t3)
    assert jnp.allclose(l3, r3, rtol=1e-4, atol=1e-4), (l3, r3)

    print("KERNEL_OK")
</pallas_src>

<mosaic_0001>
module attributes {stable_mosaic.version = 11 : i64} {
  func.func @kernel(%arg0: i32, %arg1: i32, %arg2: memref<32x128xf32, #tpu.memory_space<vmem>>, %arg3: memref<32x128xf32, #tpu.memory_space<vmem>>, %arg4: memref<8x128xf32, #tpu.memory_space<vmem>>, %arg5: memref<8x128xf32, #tpu.memory_space<vmem>>) attributes {dimension_semantics = [#tpu.dimension_semantics<parallel>, #tpu.dimension_semantics<arbitrary>], iteration_bounds = array<i64: 1, 1>, scalar_prefetch = 0 : i64, scratch_operands = 0 : i64, tpu.core_type = #tpu.core_type<tc>, window_params = [{transform_indices = @transform_0, window_bounds = array<i64: 32, 128>}, {transform_indices = @transform_1, window_bounds = array<i64: 32, 128>}, {transform_indices = @transform_2, window_bounds = array<i64: 8, 128>}, {transform_indices = @transform_3, window_bounds = array<i64: 8, 128>}]} {
    %c0_i32 = arith.constant 0 : i32
    %0 = arith.cmpi eq, %arg1, %c0_i32 : i32
    %1 = arith.extui %0 : i1 to i32
    %c0_i32_0 = arith.constant 0 : i32
    %2 = arith.cmpi ne, %1, %c0_i32_0 : i32
    scf.if %2 {
      %cst = arith.constant 0.000000e+00 : f32
      %13 = vector.broadcast %cst : f32 to vector<8x128xf32>
      %c0 = arith.constant 0 : index
      %c0_4 = arith.constant 0 : index
      %14 = vector.load %arg4[%c0, %c0_4] : memref<8x128xf32, #tpu.memory_space<vmem>>, vector<8x128xf32>
      tpu.vector_store %arg4[%c0, %c0_4], %13 {strides = array<i32>} : memref<8x128xf32, #tpu.memory_space<vmem>>, vector<8x128xf32>,
      %cst_5 = arith.constant 0.000000e+00 : f32
      %15 = vector.broadcast %cst_5 : f32 to vector<8x128xf32>
      %c0_6 = arith.constant 0 : index
      %c0_7 = arith.constant 0 : index
      %16 = vector.load %arg5[%c0_6, %c0_7] : memref<8x128xf32, #tpu.memory_space<vmem>>, vector<8x128xf32>
      tpu.vector_store %arg5[%c0_6, %c0_7], %15 {strides = array<i32>} : memref<8x128xf32, #tpu.memory_space<vmem>>, vector<8x128xf32>,
    } else {
    }
    %c1_i32 = arith.constant 1 : i32
    %3 = arith.muli %arg0, %c1_i32 : i32
    %4 = arith.addi %3, %arg1 : i32
    %c32_i32 = arith.constant 32 : i32
    %5 = arith.muli %4, %c32_i32 : i32
    %c32_i32_1 = arith.constant 32 : i32
    %6 = arith.addi %5, %c32_i32_1 : i32
    %c16_i32 = arith.constant 16 : i32
    %7 = arith.cmpi sle, %6, %c16_i32 : i32
    %8 = arith.extui %7 : i1 to i32
    %c0_i32_2 = arith.constant 0 : i32
    %9 = arith.cmpi ne, %8, %c0_i32_2 : i32
    scf.if %9 {
      %cst = arith.constant 0.000000e+00 : f32
      %13 = vector.broadcast %cst : f32 to vector<8x128xf32>
      %c0_i32_4 = arith.constant 0 : i32
      %c32_i32_5 = arith.constant 32 : i32
      %14 = arith.muli %c0_i32_4, %c32_i32_5 : i32
      %15 = tpu.assume_multiple %14, 32 : i32
      %16 = arith.index_cast %15 : i32 to index
      %c0 = arith.constant 0 : index
      %17 = vector.load %arg2[%16, %c0] : memref<32x128xf32, #tpu.memory_space<vmem>>, vector<32x128xf32>
      %18 = arith.index_cast %15 : i32 to index
      %c0_6 = arith.constant 0 : index
      %19 = vector.load %arg3[%18, %c0_6] : memref<32x128xf32, #tpu.memory_space<vmem>>, vector<32x128xf32>
      %20 = arith.subf %17, %19 : vector<32x128xf32>
      %21 = arith.mulf %20, %20 : vector<32x128xf32>
      %22 = math.absf %20 : vector<32x128xf32>
      %cst_7 = arith.constant 1.000000e+00 : f32
      %23 = vector.broadcast %cst_7 : f32 to vector<32x128xf32>
      %24 = arith.subf %22, %23 : vector<32x128xf32>
      %cst_8 = arith.constant 0.000000e+00 : f32
      %25 = vector.broadcast %cst_8 : f32 to vector<32x128xf32>
      %26 = arith.maximumf %24, %25 : vector<32x128xf32>
      %27 = arith.mulf %26, %26 : vector<32x128xf32>
      %28 = vector.shape_cast %21 : vector<32x128xf32> to vector<4x8x128xf32>
      %cst_9 = arith.constant dense<0.000000e+00> : vector<8x128xf32>
      %29 = vector.multi_reduction <add>, %28, %cst_9 [0] : vector<4x8x128xf32> to vector<8x128xf32>
      %30 = arith.addf %13, %29 : vector<8x128xf32>
      %31 = vector.shape_cast %27 : vector<32x128xf32> to vector<4x8x128xf32>
      %cst_10 = arith.constant dense<0.000000e+00> : vector<8x128xf32>
      %32 = vector.multi_reduction <add>, %31, %cst_10 [0] : vector<4x8x128xf32> to vector<8x128xf32>
      %33 = arith.addf %13, %32 : vector<8x128xf32>
      %c1_i32_11 = arith.constant 1 : i32
      %c0_12 = arith.constant 0 : index
      %c0_13 = arith.constant 0 : index
      %34 = vector.load %arg4[%c0_12, %c0_13] : memref<8x128xf32, #tpu.memory_space<vmem>>, vector<8x128xf32>
      %35 = arith.addf %34, %30 : vector<8x128xf32>
      %c0_14 = arith.constant 0 : index
      %c0_15 = arith.constant 0 : index
      %36 = vector.load %arg4[%c0_14, %c0_15] : memref<8x128xf32, #tpu.memory_space<vmem>>, vector<8x128xf32>
      tpu.vector_store %arg4[%c0_14, %c0_15], %35 {strides = array<i32>} : memref<8x128xf32, #tpu.memory_space<vmem>>, vector<8x128xf32>,
      %c0_16 = arith.constant 0 : index
      %c0_17 = arith.constant 0 : index
      %37 = vector.load %arg5[%c0_16, %c0_17] : memref<8x128xf32, #tpu.memory_space<vmem>>, vector<8x128xf32>
      %38 = arith.addf %37, %33 : vector<8x128xf32>
      %c0_18 = arith.constant 0 : index
      %c0_19 = arith.constant 0 : index
      %39 = vector.load %arg5[%c0_18, %c0_19] : memref<8x128xf32, #tpu.memory_space<vmem>>, vector<8x128xf32>
      tpu.vector_store %arg5[%c0_18, %c0_19], %38 {strides = array<i32>} : memref<8x128xf32, #tpu.memory_space<vmem>>, vector<8x128xf32>,
    } else {
    }
    %true = arith.constant true
    %10 = arith.xori %7, %true : i1
    %11 = arith.extui %10 : i1 to i32
    %c0_i32_3 = arith.constant 0 : i32
    %12 = arith.cmpi ne, %11, %c0_i32_3 : i32
    scf.if %12 {
      %13 = tpu.iota {dimensions = array<i32: 0>} : vector<32x128xi32>
      %cst = arith.constant 0.000000e+00 : f32
      %14 = vector.broadcast %cst : f32 to vector<8x128xf32>
      %c0_i32_4 = arith.constant 0 : i32
      %c32_i32_5 = arith.constant 32 : i32
      %15 = arith.muli %c0_i32_4, %c32_i32_5 : i32
      %16 = tpu.assume_multiple %15, 32 : i32
      %17 = arith.index_cast %16 : i32 to index
      %c0 = arith.constant 0 : index
      %18 = vector.load %arg2[%17, %c0] : memref<32x128xf32, #tpu.memory_space<vmem>>, vector<32x128xf32>
      %19 = arith.index_cast %16 : i32 to index
      %c0_6 = arith.constant 0 : index
      %20 = vector.load %arg3[%19, %c0_6] : memref<32x128xf32, #tpu.memory_space<vmem>>, vector<32x128xf32>
      %21 = arith.subf %18, %20 : vector<32x128xf32>
      %22 = arith.addi %5, %16 : i32
      %23 = vector.broadcast %22 : i32 to vector<32x128xi32>
      %24 = arith.addi %23, %13 : vector<32x128xi32>
      %c16_i32_7 = arith.constant 16 : i32
      %25 = vector.broadcast %c16_i32_7 : i32 to vector<32x128xi32>
      %26 = arith.cmpi slt, %24, %25 : vector<32x128xi32>
      %cst_8 = arith.constant 0.000000e+00 : f32
      %27 = vector.broadcast %cst_8 : f32 to vector<32x128xf32>
      %28 = arith.select %26, %21, %27 : vector<32x128xi1>, vector<32x128xf32>
      %29 = arith.mulf %28, %28 : vector<32x128xf32>
      %30 = math.absf %28 : vector<32x128xf32>
      %cst_9 = arith.constant 1.000000e+00 : f32
      %31 = vector.broadcast %cst_9 : f32 to vector<32x128xf32>
      %32 = arith.subf %30, %31 : vector<32x128xf32>
      %cst_10 = arith.constant 0.000000e+00 : f32
      %33 = vector.broadcast %cst_10 : f32 to vector<32x128xf32>
      %34 = arith.maximumf %32, %33 : vector<32x128xf32>
      %35 = arith.mulf %34, %34 : vector<32x128xf32>
      %36 = vector.shape_cast %29 : vector<32x128xf32> to vector<4x8x128xf32>
      %cst_11 = arith.constant dense<0.000000e+00> : vector<8x128xf32>
      %37 = vector.multi_reduction <add>, %36, %cst_11 [0] : vector<4x8x128xf32> to vector<8x128xf32>
      %38 = arith.addf %14, %37 : vector<8x128xf32>
      %39 = vector.shape_cast %35 : vector<32x128xf32> to vector<4x8x128xf32>
      %cst_12 = arith.constant dense<0.000000e+00> : vector<8x128xf32>
      %40 = vector.multi_reduction <add>, %39, %cst_12 [0] : vector<4x8x128xf32> to vector<8x128xf32>
      %41 = arith.addf %14, %40 : vector<8x128xf32>
      %c1_i32_13 = arith.constant 1 : i32
      %c0_14 = arith.constant 0 : index
      %c0_15 = arith.constant 0 : index
      %42 = vector.load %arg4[%c0_14, %c0_15] : memref<8x128xf32, #tpu.memory_space<vmem>>, vector<8x128xf32>
      %43 = arith.addf %42, %38 : vector<8x128xf32>
      %c0_16 = arith.constant 0 : index
      %c0_17 = arith.constant 0 : index
      %44 = vector.load %arg4[%c0_16, %c0_17] : memref<8x128xf32, #tpu.memory_space<vmem>>, vector<8x128xf32>
      tpu.vector_store %arg4[%c0_16, %c0_17], %43 {strides = array<i32>} : memref<8x128xf32, #tpu.memory_space<vmem>>, vector<8x128xf32>,
      %c0_18 = arith.constant 0 : index
      %c0_19 = arith.constant 0 : index
      %45 = vector.load %arg5[%c0_18, %c0_19] : memref<8x128xf32, #tpu.memory_space<vmem>>, vector<8x128xf32>
      %46 = arith.addf %45, %41 : vector<8x128xf32>
      %c0_20 = arith.constant 0 : index
      %c0_21 = arith.constant 0 : index
      %47 = vector.load %arg5[%c0_20, %c0_21] : memref<8x128xf32, #tpu.memory_space<vmem>>, vector<8x128xf32>
      tpu.vector_store %arg5[%c0_20, %c0_21], %46 {strides = array<i32>} : memref<8x128xf32, #tpu.memory_space<vmem>>, vector<8x128xf32>,
    } else {
    }
    return
  }
  func.func @transform_0(%arg0: i32, %arg1: i32) -> (i32, i32) {
    %c1_i32 = arith.constant 1 : i32
    %0 = arith.muli %arg0, %c1_i32 : i32
    %1 = arith.addi %0, %arg1 : i32
    %c0_i32 = arith.constant 0 : i32
    %2 = arith.minsi %1, %c0_i32 : i32
    %c0_i32_0 = arith.constant 0 : i32
    %c0_i32_1 = arith.constant 0 : i32
    return %2, %c0_i32_0 : i32, i32
  }
  func.func @transform_1(%arg0: i32, %arg1: i32) -> (i32, i32) {
    %c1_i32 = arith.constant 1 : i32
    %0 = arith.muli %arg0, %c1_i32 : i32
    %1 = arith.addi %0, %arg1 : i32
    %c0_i32 = arith.constant 0 : i32
    %2 = arith.minsi %1, %c0_i32 : i32
    %c0_i32_0 = arith.constant 0 : i32
    %c0_i32_1 = arith.constant 0 : i32
    return %2, %c0_i32_0 : i32, i32
  }
  func.func @transform_2(%arg0: i32, %arg1: i32) -> (i32, i32) {
    %c0_i32 = arith.constant 0 : i32
    %c0_i32_0 = arith.constant 0 : i32
    return %arg0, %c0_i32 : i32, i32
  }
  func.func @transform_3(%arg0: i32, %arg1: i32) -> (i32, i32) {
    %c0_i32 = arith.constant 0 : i32
    %c0_i32_0 = arith.constant 0 : i32
    return %arg0, %c0_i32 : i32, i32
  }
}

</mosaic_0001>

<llo_original>
// kernel: custom_loss.1
$region0: #{custom_loss.1}
  #allocation0 [shape = 'u32[]', space=smem, size = 0x4, offset = 0x4, fixed_abs, tag = 'smem constant byte address 0x4 - core index']
  #allocation1 [shape = 'u32[144,128]{1,0:T(1,128)}', space=vmem, size = 0x12000, scoped, tag = 'internal scratch']
  %s0 = inlined_call_operand.vmem [shape: f32[16,128], index: 0, kind: input, shape index: {}]
  %s1 = inlined_call_operand.vmem [shape: f32[16,128], index: 1, kind: input, shape index: {}]
  %s2 = inlined_call_operand.vmem [shape: f32[8,128], index: 2, kind: output, shape index: {0}]
  %s3 = inlined_call_operand.vmem [shape: f32[8,128], index: 3, kind: output, shape index: {1}]
  %4 = xla_tuple %s2, %s3
  %s5 = sld [smem:[#allocation0]]
  $region38: #{custom_loss.1} parent=0
    _
  %s7 = ssub.s32 1, %s5
  %s8 = scalar_select 0, %s7, %s5
  // Predicated region
  $region2: #{custom_loss.1} parent=0 // pred_check
    _
  $region3: #{custom_loss.1} parent=0 // pred_check_branch
    %10 = sbr.rel (0) target = $region5
  $region4: #{custom_loss.1} parent=0 // pred_region
    %s11 = sadd.s32 0, 0
    %p12 = scmp.lt.s32.totalorder %s11, 0
    %s13 = scalar_select %p12, %s11, 0
    %s14 = smul.u32 4, %s13
    %s15 = ssub.s32 2, %s14
    %s16 = smul.u32 128, %s15
    %p17 = scmp.lt.s32.totalorder %s14, 1
    %s18 = scalar_select %p17, %s14, 1
    %s19 = smul.addr %s18, 8
    %s20 = scalar_lea.vmem %s0, %s19
    %s21 = sadd.s32 0, 0
    %p22 = scmp.lt.s32.totalorder %s21, 0
    %s23 = scalar_select %p22, %s21, 0
    %s24 = smul.u32 4, %s23
    %s25 = ssub.s32 2, %s24
    %s26 = smul.u32 128, %s25
  $region5: #{custom_loss.1} parent=0 // pred_fallthru
    _
  // Predicated region
  $region6: #{custom_loss.1} parent=0 // pred_check
    _
  $region7: #{custom_loss.1} parent=0 // pred_check_branch
    %28 = sbr.rel (0) target = $region9
  $region8: #{custom_loss.1} parent=0 // pred_region
    %s29 = sadd.s32 0, 0
    %p30 = scmp.lt.s32.totalorder %s29, 0
    %s31 = scalar_select %p30, %s29, 0
    %s32 = smul.u32 4, %s31
    %s33 = ssub.s32 2, %s32
    %s34 = smul.u32 128, %s33
    %p35 = scmp.lt.s32.totalorder %s32, 1
    %s36 = scalar_select %p35, %s32, 1
    %s37 = smul.addr %s36, 8
    %s38 = scalar_lea.vmem %s1, %s37
    %s39 = sadd.s32 0, 0
    %p40 = scmp.lt.s32.totalorder %s39, 0
    %s41 = scalar_select %p40, %s39, 0
    %s42 = smul.u32 4, %s41
    %s43 = ssub.s32 2, %s42
    %s44 = smul.u32 128, %s43
  $region9: #{custom_loss.1} parent=0 // pred_fallthru
    _
  %s45 = sadd.s32 0, 0
  %p46 = scmp.lt.s32.totalorder %s45, 0
  %s47 = scalar_select %p46, %s45, 0
  %s48 = smul.u32 4, %s47
  %s49 = ssub.s32 2, %s48
  %s50 = smul.u32 128, %s49
  %p51 = scmp.lt.s32.totalorder %s48, 1
  %s52 = scalar_select %p51, %s48, 1
  %s53 = smul.addr %s52, 8
  %s54 = scalar_lea.vmem %s0, %s53
  %s55 = sadd.s32 0, 0
  %p56 = scmp.lt.s32.totalorder %s55, 0
  %s57 = scalar_select %p56, %s55, 0
  %s58 = smul.u32 4, %s57
  %s59 = ssub.s32 2, %s58
  %s60 = smul.u32 128, %s59
  %p61 = scmp.lt.s32.totalorder %s58, 1
  %s62 = scalar_select %p61, %s58, 1
  %s63 = smul.addr %s62, 8
  %s64 = scalar_lea.vmem %s1, %s63
  %s65 = sadd.s32 0, 0
  %p66 = scmp.lt.s32.totalorder %s65, 0
  %s67 = scalar_select %p66, %s65, 0
  %s68 = smul.u32 4, %s67
  %s69 = ssub.s32 2, %s68
  %s70 = smul.u32 128, %s69
  %p71 = scmp.lt.s32.totalorder %s68, 1
  %s72 = scalar_select %p71, %s68, 1
  %s73 = smul.addr %s72, 8
  %s74 = scalar_lea.vmem %s0, %s73
  %s75 = sadd.s32 0, 0
  %p76 = scmp.lt.s32.totalorder %s75, 0
  %s77 = scalar_select %p76, %s75, 0
  %s78 = smul.u32 4, %s77
  %s79 = ssub.s32 2, %s78
  %s80 = smul.u32 128, %s79
  %s81 = sadd.s32 0, 0
  %p82 = scmp.lt.s32.totalorder %s81, 0
  %s83 = scalar_select %p82, %s81, 0
  %s84 = smul.u32 4, %s83
  %s85 = ssub.s32 2, %s84
  %s86 = smul.u32 128, %s85
  %p87 = scmp.lt.s32.totalorder %s84, 1
  %s88 = scalar_select %p87, %s84, 1
  %s89 = smul.addr %s88, 8
  %s90 = scalar_lea.vmem %s1, %s89
  %s91 = sadd.s32 0, 0
  %p92 = scmp.lt.s32.totalorder %s91, 0
  %s93 = scalar_select %p92, %s91, 0
  %s94 = smul.u32 4, %s93
  %s95 = ssub.s32 2, %s94
  %s96 = smul.u32 128, %s95
  %p97 = scmp.eq.s32.totalorder 0, 0
  // Predicated region
  $region10: #{custom_loss.1} parent=0 // pred_check
    %p98 = pneg %p97
  $region11: #{custom_loss.1} parent=0 // pred_check_branch
    %100 = sbr.rel (%p98) target = $region13
  $region12: #{custom_loss.1} parent=0 // pred_region
    %101 = vst [vmem:[%s2] sm:$0xff] 0.0
    %102 = vst [vmem:[%s3] sm:$0xff] 0.0
  $region13: #{custom_loss.1} parent=0 // pred_fallthru
    _
  %s103 = sadd.s32 0, 0
  %s104 = smul.u32 %s103, 32
  %s105 = sadd.s32 %s104, 32
  %p106 = scmp.le.s32.totalorder %s105, 16
  // Predicated region
  $region14: #{custom_loss.1} parent=0 // pred_check
    %p107 = pneg %p106
  $region15: #{custom_loss.1} parent=0 // pred_check_branch
    %109 = sbr.rel (%p107) target = $region17
  $region16: #{custom_loss.1} parent=0 // pred_region
    %v110 = vld [vmem:[%s74] sm:$0xff]
    %v111 = vld [vmem:[%s74 + $0x8] sm:$0xff]
    %v112 = vld [vmem:[%s74 + $0x10] sm:$0xff]
    %v113 = vld [vmem:[%s74 + $0x18] sm:$0xff]
    %v114 = vld [vmem:[%s90] sm:$0xff]
    %v115 = vld [vmem:[%s90 + $0x8] sm:$0xff]
    %v116 = vld [vmem:[%s90 + $0x10] sm:$0xff]
    %v117 = vld [vmem:[%s90 + $0x18] sm:$0xff]
    %v118 = vsub.f32 %v110, %v114
    %v119 = vsub.f32 %v111, %v115
    %v120 = vsub.f32 %v112, %v116
    %v121 = vsub.f32 %v113, %v117
    %v122 = vmul.f32 %v118, %v118
    %v123 = vmul.f32 %v119, %v119
    %v124 = vmul.f32 %v120, %v120
    %v125 = vmul.f32 %v121, %v121
    %v126 = vand.u32 2147483647, %v118
    %v127 = vand.u32 2147483647, %v119
    %v128 = vand.u32 2147483647, %v120
    %v129 = vand.u32 2147483647, %v121
    %v130 = vsub.f32 %v126, 1.0
    %v131 = vsub.f32 %v127, 1.0
    %v132 = vsub.f32 %v128, 1.0
    %v133 = vsub.f32 %v129, 1.0
    %v134 = vmax.f32 %v130, 0.0
    %v135 = vmax.f32 %v131, 0.0
    %v136 = vmax.f32 %v132, 0.0
    %v137 = vmax.f32 %v133, 0.0
    %v138 = vmul.f32 %v134, %v134
    %v139 = vmul.f32 %v135, %v135
    %v140 = vmul.f32 %v136, %v136
    %v141 = vmul.f32 %v137, %v137
    %v142 = vadd.f32 %v122, %v123
    %v143 = vadd.f32 %v142, %v124
    %v144 = vadd.f32 %v143, %v125
    %v145 = vadd.f32 %v144, 0.0
    %v146 = vadd.f32 %v138, %v139
    %v147 = vadd.f32 %v146, %v140
    %v148 = vadd.f32 %v147, %v141
    %v149 = vadd.f32 %v148, 0.0
    %v150 = vld [vmem:[%s2] sm:$0xff]
    %v151 = vadd.f32 %v150, %v145
    %152 = vst [vmem:[%s2] sm:$0xff] %v151
    %v153 = vld [vmem:[%s3] sm:$0xff]
    %v154 = vadd.f32 %v153, %v149
    %155 = vst [vmem:[%s3] sm:$0xff] %v154
  $region17: #{custom_loss.1} parent=0 // pred_fallthru
    _
  %p156 = scmp.gt.s32.totalorder %s105, 16
  // Predicated region
  $region18: #{custom_loss.1} parent=0 // pred_check
    %p157 = pneg %p156
  $region19: #{custom_loss.1} parent=0 // pred_check_branch
    %159 = sbr.rel (%p157) target = $region21
  $region20: #{custom_loss.1} parent=0 // pred_region
    %v160 = vlaneseq
    %v161 = vshrl.u32 %v160, 7
    %v162 = vadd.s32 %v161, 8
    %v163 = vadd.s32 %v161, 16
    %v164 = vadd.s32 %v161, 24
    %v165 = vld [vmem:[%s74] sm:$0xff]
    %v166 = vld [vmem:[%s74 + $0x8] sm:$0xff]
    %v167 = vld [vmem:[%s74 + $0x10] sm:$0xff]
    %v168 = vld [vmem:[%s74 + $0x18] sm:$0xff]
    %v169 = vld [vmem:[%s90] sm:$0xff]
    %v170 = vld [vmem:[%s90 + $0x8] sm:$0xff]
    %v171 = vld [vmem:[%s90 + $0x10] sm:$0xff]
    %v172 = vld [vmem:[%s90 + $0x18] sm:$0xff]
    %v173 = vsub.f32 %v165, %v169
    %v174 = vsub.f32 %v166, %v170
    %v175 = vsub.f32 %v167, %v171
    %v176 = vsub.f32 %v168, %v172
    %s177 = sadd.s32 %s104, 0
    %v178 = vstv %s177
    %v179 = vadd.s32 %v178, %v161
    %v180 = vadd.s32 %v178, %v162
    %v181 = vadd.s32 %v178, %v163
    %v182 = vadd.s32 %v178, %v164
    %vm183 = vcmp.lt.s32.totalorder %v179, 16
    %vm184 = vcmp.lt.s32.totalorder %v180, 16
    %vm185 = vcmp.lt.s32.totalorder %v181, 16
    %vm186 = vcmp.lt.s32.totalorder %v182, 16
    %v187 = vsel %vm183, %v173, 0.0
    %v188 = vsel %vm184, %v174, 0.0
    %v189 = vsel %vm185, %v175, 0.0
    %v190 = vsel %vm186, %v176, 0.0
    %v191 = vmul.f32 %v187, %v187
    %v192 = vmul.f32 %v188, %v188
    %v193 = vmul.f32 %v189, %v189
    %v194 = vmul.f32 %v190, %v190
    %v195 = vand.u32 2147483647, %v187
    %v196 = vand.u32 2147483647, %v188
    %v197 = vand.u32 2147483647, %v189
    %v198 = vand.u32 2147483647, %v190
    %v199 = vsub.f32 %v195, 1.0
    %v200 = vsub.f32 %v196, 1.0
    %v201 = vsub.f32 %v197, 1.0
    %v202 = vsub.f32 %v198, 1.0
    %v203 = vmax.f32 %v199, 0.0
    %v204 = vmax.f32 %v200, 0.0
    %v205 = vmax.f32 %v201, 0.0
    %v206 = vmax.f32 %v202, 0.0
    %v207 = vmul.f32 %v203, %v203
    %v208 = vmul.f32 %v204, %v204
    %v209 = vmul.f32 %v205, %v205
    %v210 = vmul.f32 %v206, %v206
    %v211 = vadd.f32 %v191, %v192
    %v212 = vadd.f32 %v211, %v193
    %v213 = vadd.f32 %v212, %v194
    %v214 = vadd.f32 %v213, 0.0
    %v215 = vadd.f32 %v207, %v208
    %v216 = vadd.f32 %v215, %v209
    %v217 = vadd.f32 %v216, %v210
    %v218 = vadd.f32 %v217, 0.0
    %v219 = vld [vmem:[%s2] sm:$0xff]
    %v220 = vadd.f32 %v219, %v214
    %221 = vst [vmem:[%s2] sm:$0xff] %v220
    %v222 = vld [vmem:[%s3] sm:$0xff]
    %v223 = vadd.f32 %v222, %v218
    %224 = vst [vmem:[%s3] sm:$0xff] %v223
  $region21: #{custom_loss.1} parent=0 // pred_fallthru
    _
  // Predicated region
  $region22: #{custom_loss.1} parent=0 // pred_check
    _
  $region23: #{custom_loss.1} parent=0 // pred_check_branch
    %226 = sbr.rel (0) target = $region25
  $region24: #{custom_loss.1} parent=0 // pred_region
    _
  $region25: #{custom_loss.1} parent=0 // pred_fallthru
    _
  // Predicated region
  $region26: #{custom_loss.1} parent=0 // pred_check
    _
  $region27: #{custom_loss.1} parent=0 // pred_check_branch
    %228 = sbr.rel (0) target = $region29
  $region28: #{custom_loss.1} parent=0 // pred_region
    _
  $region29: #{custom_loss.1} parent=0 // pred_fallthru
    _
  // Predicated region
  $region30: #{custom_loss.1} parent=0 // pred_check
    _
  $region31: #{custom_loss.1} parent=0 // pred_check_branch
    %230 = sbr.rel (0) target = $region33
  $region32: #{custom_loss.1} parent=0 // pred_region
    _
  $region33: #{custom_loss.1} parent=0 // pred_fallthru
    _
  // Predicated region
  $region34: #{custom_loss.1} parent=0 // pred_check
    _
  $region35: #{custom_loss.1} parent=0 // pred_check_branch
    %232 = sbr.rel (0) target = $region37
  $region36: #{custom_loss.1} parent=0 // pred_region
    _
  $region37: #{custom_loss.1} parent=0 // pred_fallthru
    _

</llo_original>
